<compile_context>
chip_gen: v7x
topology: tpu7x:2x2x1
jax: 0.10.0
libtpu: 0.0.40
codegen_flags: <defaults>
</compile_context>

<pallas_src>
import functools

import jax
import jax.numpy as jnp
from jax.experimental import pallas as pl
from jax.experimental.pallas import tpu as pltpu

LANE = 128
_MAX_TILE = 2048
# Conservative VMEM budget: fits v5e's 16 MiB scoped default with headroom,
# and trivially fits v6e (32/128 MiB) and v7x (32/64 MiB).
_VMEM_BUDGET = 12 * 1024 * 1024


# ----------------------------- kernels --------------------------------------


def _layer1_kernel(x_ref, w1_ref, b1_ref, h_ref):
    # x: (B, Din_p) bf16 ; w1: (Din_p, TH) bf16 ; b1: (1, TH) f32 -> h: (B, TH) bf16
    h = jnp.dot(x_ref[...], w1_ref[...], preferred_element_type=jnp.float32)
    h = jnp.maximum(h + b1_ref[...], 0.0)            # bias + ReLU in f32 (VPU)
    h_ref[...] = h.astype(jnp.bfloat16)              # bf16 back out for the 2nd MXU pass


def _layer2_logsoftmax_kernel(h_ref, w2_ref, b2_ref, o_ref):
    # h: (B, H_p) bf16 ; w2: (H_p, TN) bf16 ; b2: (1, TN) f32 -> o: (B, TN) f32
    logits = jnp.dot(h_ref[...], w2_ref[...], preferred_element_type=jnp.float32)
    logits = logits + b2_ref[...]
    # log_softmax over dim=0 (batch axis, as torch F.log_softmax(..., dim=0)).
    # Columns are independent and the full batch is resident (B never tiled),
    # so the per-column-tile reduction is exact.
    m = jnp.max(logits, axis=0, keepdims=True)
    shifted = logits - m
    lse = jnp.log(jnp.sum(jnp.exp(shifted), axis=0, keepdims=True))
    o_ref[...] = shifted - lse


# ----------------------------- helpers ---------------------------------------


def _round_up(n, m):
    return ((n + m - 1) // m) * m


def _pick_tile(extent_p, per_col_bytes, invariant_bytes,
               budget=_VMEM_BUDGET, max_tile=_MAX_TILE):
    """Largest multiple of 128 that divides extent_p and fits the VMEM budget."""
    by_budget = max((budget - invariant_bytes) // max(per_col_bytes, 1), LANE)
    t = min(extent_p, max_tile, by_budget)
    t = max((t // LANE) * LANE, LANE)
    while extent_p % t != 0:   # extent_p is a multiple of LANE -> terminates at LANE
        t -= LANE
    return t


def _maybe_single_buffered(block_shape, index_map, n_steps):
    """Grid-invariant input: one VMEM buffer is enough when the grid has >1 step."""
    if n_steps > 1:
        return pl.BlockSpec(block_shape, index_map, pipeline_mode=pl.Buffered(1))
    return pl.BlockSpec(block_shape, index_map)


# --------------------------- parameter prep ----------------------------------


def prepare_params(w1, b1, w2, b2):
    """One-time weight padding + bf16 cast (hoisted out of the per-call path)."""
    in_dim, hidden_dim = w1.shape
    out_dim = w2.shape[1]
    din_p = _round_up(in_dim, LANE)
    h_p = _round_up(hidden_dim, LANE)
    dout_p = _round_up(out_dim, LANE)

    w1_p = jnp.zeros((din_p, h_p), jnp.bfloat16).at[:in_dim, :hidden_dim].set(
        w1.astype(jnp.bfloat16))
    b1_p = jnp.zeros((1, h_p), jnp.float32).at[0, :hidden_dim].set(
        b1.astype(jnp.float32))
    w2_p = jnp.zeros((h_p, dout_p), jnp.bfloat16).at[:hidden_dim, :out_dim].set(
        w2.astype(jnp.bfloat16))
    b2_p = jnp.zeros((1, dout_p), jnp.float32).at[0, :out_dim].set(
        b2.astype(jnp.float32))
    return {"w1": w1_p, "b1": b1_p, "w2": w2_p, "b2": b2_p, "out_dim": out_dim}


# ------------------------------ forward --------------------------------------


@functools.partial(jax.jit, static_argnames=("out_dim",))
def _forward_padded(x, w1_p, b1_p, w2_p, b2_p, *, out_dim):
    B, in_dim = x.shape
    din_p, h_p = w1_p.shape
    dout_p = w2_p.shape[1]

    # Only the activations are padded/cast per call (fuses under jit).
    x_p = jnp.zeros((B, din_p), jnp.bfloat16).at[:, :in_dim].set(
        x.astype(jnp.bfloat16))

    # ---- layer 1: h = ReLU(x @ W1 + b1), computed exactly once ----
    per_col_a = 2 * (din_p * 2 + 4 + B * 2)        # dbl-buffered W1 col + b1 + h col
    invariant_a = 2 * B * din_p * 2                # x (worst case: double-buffered)
    tile_h = _pick_tile(h_p, per_col_a, invariant_a)
    n_h = h_p // tile_h

    h = pl.pallas_call(
        _layer1_kernel,
        out_shape=jax.ShapeDtypeStruct((B, h_p), jnp.bfloat16),
        grid=(n_h,),
        in_specs=[
            _maybe_single_buffered((B, din_p), lambda j: (0, 0), n_h),  # x (invariant)
            pl.BlockSpec((din_p, tile_h), lambda j: (0, j)),            # W1 column tile
            pl.BlockSpec((1, tile_h), lambda j: (0, j)),                # b1 column tile
        ],
        out_specs=pl.BlockSpec((B, tile_h), lambda j: (0, j)),
        compiler_params=pltpu.CompilerParams(
            dimension_semantics=("parallel",)),
        cost_estimate=pl.CostEstimate(
            flops=2 * B * din_p * h_p,
            transcendentals=0,
            bytes_accessed=(B * din_p * 2 + din_p * h_p * 2
                            + h_p * 4 + B * h_p * 2)),
    )(x_p, w1_p, b1_p)

    # ---- layer 2 + log_softmax(dim=0), tiled over output columns ----
    # TODO(synk): for extremely large hidden_dim, add a reduction grid axis so
    # the full (B, H_p) h block need not be VMEM-resident.
    per_col_b = 2 * (h_p * 2 + 4 + B * 4)          # dbl-buffered W2 col + b2 + out col
    invariant_b = 2 * B * h_p * 2                  # h (worst case: double-buffered)
    tile_n = _pick_tile(dout_p, per_col_b, invariant_b)
    n_n = dout_p // tile_n

    out_p = pl.pallas_call(
        _layer2_logsoftmax_kernel,
        out_shape=jax.ShapeDtypeStruct((B, dout_p), jnp.float32),
        grid=(n_n,),
        in_specs=[
            _maybe_single_buffered((B, h_p), lambda j: (0, 0), n_n),    # h (invariant)
            pl.BlockSpec((h_p, tile_n), lambda j: (0, j)),              # W2 column tile
            pl.BlockSpec((1, tile_n), lambda j: (0, j)),                # b2 column tile
        ],
        out_specs=pl.BlockSpec((B, tile_n), lambda j: (0, j)),
        compiler_params=pltpu.CompilerParams(
            dimension_semantics=("parallel",)),
        cost_estimate=pl.CostEstimate(
            flops=2 * B * h_p * dout_p,
            transcendentals=B * dout_p,
            bytes_accessed=(B * h_p * 2 + h_p * dout_p * 2
                            + dout_p * 4 + B * dout_p * 4)),
    )(h, w2_p, b2_p)

    return out_p[:, :out_dim]


def neural_net_forward(x, params):
    """x: (B, input_dim) f32; params from prepare_params()."""
    return _forward_padded(x, params["w1"], params["b1"], params["w2"],
                           params["b2"], out_dim=params["out_dim"])


# ------------------------------- init / test ---------------------------------


def init_linear_params(key, fan_in, fan_out):
    """Mimics torch.nn.Linear default init: U(-1/sqrt(fan_in), +1/sqrt(fan_in))."""
    kw, kb = jax.random.split(key)
    bound = 1.0 / jnp.sqrt(float(fan_in))
    w = jax.random.uniform(kw, (fan_in, fan_out), jnp.float32, -bound, bound)
    b = jax.random.uniform(kb, (fan_out,), jnp.float32, -bound, bound)
    return w, b


if __name__ == "__main__":
    # Small shapes consistent with the module's forward.
    batch, input_dim, hidden_dim, output_dim = 8, 32, 64, 16

    key = jax.random.PRNGKey(0)
    kx, k1, k2 = jax.random.split(key, 3)

    x = jax.random.normal(kx, (batch, input_dim), jnp.float32)
    w1, b1 = init_linear_params(k1, input_dim, hidden_dim)
    w2, b2 = init_linear_params(k2, hidden_dim, output_dim)

    params = prepare_params(w1, b1, w2, b2)          # one-time padding + bf16 cast
    out = neural_net_forward(x, params)
    out = jax.block_until_ready(out)
    assert out.shape == (batch, output_dim)

    # Reference with the SAME bf16-input / f32-accumulate math (tight check).
    xb = x.astype(jnp.bfloat16)
    w1b = w1.astype(jnp.bfloat16)
    w2b = w2.astype(jnp.bfloat16)
    h_ref = jnp.maximum(
        jnp.dot(xb, w1b, preferred_element_type=jnp.float32) + b1, 0.0)
    logits_ref = jnp.dot(h_ref.astype(jnp.bfloat16), w2b,
                         preferred_element_type=jnp.float32) + b2
    ref_bf16 = jax.nn.log_softmax(logits_ref, axis=0)        # dim=0, as in torch
    assert jnp.allclose(out, ref_bf16, atol=1e-3, rtol=1e-3), "mismatch vs bf16 reference"

    # Loose check against the full-f32 reference of the original module's math.
    h32 = jnp.maximum(x @ w1 + b1, 0.0)
    ref_f32 = jax.nn.log_softmax(h32 @ w2 + b2, axis=0)
    assert jnp.allclose(out, ref_f32, atol=5e-2, rtol=5e-2), "mismatch vs f32 reference"

    print("KERNEL_OK")
</pallas_src>

<mosaic_0001>
module attributes {stable_mosaic.version = 11 : i64} {
  func.func @_layer1_kernel(%arg0: i32, %arg1: memref<8x128xbf16, #tpu.memory_space<vmem>>, %arg2: memref<128x128xbf16, #tpu.memory_space<vmem>>, %arg3: memref<1x128xf32, #tpu.memory_space<vmem>>, %arg4: memref<8x128xbf16, #tpu.memory_space<vmem>>) attributes {dimension_semantics = [#tpu.dimension_semantics<parallel>], iteration_bounds = array<i64: 1>, scalar_prefetch = 0 : i64, scratch_operands = 0 : i64, tpu.core_type = #tpu.core_type<tc>, window_params = [{pipeline_mode = #tpu.pipeline_mode<synchronous>, transform_indices = @transform_0, window_bounds = array<i64: 8, 128>}, {transform_indices = @transform_1, window_bounds = array<i64: 128, 128>}, {transform_indices = @transform_2, window_bounds = array<i64: 1, 128>}, {transform_indices = @transform_3, window_bounds = array<i64: 8, 128>}]} {
    %c0 = arith.constant 0 : index
    %c0_0 = arith.constant 0 : index
    %0 = vector.load %arg1[%c0, %c0_0] : memref<8x128xbf16, #tpu.memory_space<vmem>>, vector<8x128xbf16>
    %c0_1 = arith.constant 0 : index
    %c0_2 = arith.constant 0 : index
    %1 = vector.load %arg2[%c0_1, %c0_2] : memref<128x128xbf16, #tpu.memory_space<vmem>>, vector<128x128xbf16>
    %cst = arith.constant dense<0.000000e+00> : vector<8x128xf32>
    %2 = tpu.matmul %0, %1, %cst {dimension_numbers = #tpu.dot_dimension_numbers<[1], [0], [0], [1], [0, 0, 1, 1], [], []>} : vector<8x128xbf16>, vector<128x128xbf16>, vector<8x128xf32> -> vector<8x128xf32>
    %c0_3 = arith.constant 0 : index
    %c0_4 = arith.constant 0 : index
    %3 = vector.load %arg3[%c0_3, %c0_4] : memref<1x128xf32, #tpu.memory_space<vmem>>, vector<1x128xf32>
    %4 = vector.broadcast %3 : vector<1x128xf32> to vector<8x128xf32>
    %5 = arith.addf %2, %4 : vector<8x128xf32>
    %cst_5 = arith.constant 0.000000e+00 : f32
    %6 = vector.broadcast %cst_5 : f32 to vector<8x128xf32>
    %7 = arith.maximumf %5, %6 : vector<8x128xf32>
    %8 = arith.truncf %7 : vector<8x128xf32> to vector<8x128xbf16>
    %c0_6 = arith.constant 0 : index
    %c0_7 = arith.constant 0 : index
    %9 = vector.load %arg4[%c0_6, %c0_7] : memref<8x128xbf16, #tpu.memory_space<vmem>>, vector<8x128xbf16>
    tpu.vector_store %arg4[%c0_6, %c0_7], %8 {strides = array<i32>} : memref<8x128xbf16, #tpu.memory_space<vmem>>, vector<8x128xbf16>,
    return
  }
  func.func @transform_0(%arg0: i32) -> (i32, i32) {
    %c0_i32 = arith.constant 0 : i32
    %c0_i32_0 = arith.constant 0 : i32
    %c0_i32_1 = arith.constant 0 : i32
    return %c0_i32, %c0_i32_0 : i32, i32
  }
  func.func @transform_1(%arg0: i32) -> (i32, i32) {
    %c0_i32 = arith.constant 0 : i32
    %c0_i32_0 = arith.constant 0 : i32
    return %c0_i32, %arg0 : i32, i32
  }
  func.func @transform_2(%arg0: i32) -> (i32, i32) {
    %c0_i32 = arith.constant 0 : i32
    %c0_i32_0 = arith.constant 0 : i32
    return %c0_i32, %arg0 : i32, i32
  }
  func.func @transform_3(%arg0: i32) -> (i32, i32) {
    %c0_i32 = arith.constant 0 : i32
    %c0_i32_0 = arith.constant 0 : i32
    return %c0_i32, %arg0 : i32, i32
  }
}

module attributes {stable_mosaic.version = 11 : i64} {
  func.func @_layer2_logsoftmax_kernel(%arg0: i32, %arg1: memref<8x128xbf16, #tpu.memory_space<vmem>>, %arg2: memref<128x128xbf16, #tpu.memory_space<vmem>>, %arg3: memref<1x128xf32, #tpu.memory_space<vmem>>, %arg4: memref<8x128xf32, #tpu.memory_space<vmem>>) attributes {dimension_semantics = [#tpu.dimension_semantics<parallel>], iteration_bounds = array<i64: 1>, scalar_prefetch = 0 : i64, scratch_operands = 0 : i64, tpu.core_type = #tpu.core_type<tc>, window_params = [{pipeline_mode = #tpu.pipeline_mode<synchronous>, transform_indices = @transform_0, window_bounds = array<i64: 8, 128>}, {transform_indices = @transform_1, window_bounds = array<i64: 128, 128>}, {transform_indices = @transform_2, window_bounds = array<i64: 1, 128>}, {transform_indices = @transform_3, window_bounds = array<i64: 8, 128>}]} {
    %c0 = arith.constant 0 : index
    %c0_0 = arith.constant 0 : index
    %0 = vector.load %arg1[%c0, %c0_0] : memref<8x128xbf16, #tpu.memory_space<vmem>>, vector<8x128xbf16>
    %c0_1 = arith.constant 0 : index
    %c0_2 = arith.constant 0 : index
    %1 = vector.load %arg2[%c0_1, %c0_2] : memref<128x128xbf16, #tpu.memory_space<vmem>>, vector<128x128xbf16>
    %cst = arith.constant dense<0.000000e+00> : vector<8x128xf32>
    %2 = tpu.matmul %0, %1, %cst {dimension_numbers = #tpu.dot_dimension_numbers<[1], [0], [0], [1], [0, 0, 1, 1], [], []>} : vector<8x128xbf16>, vector<128x128xbf16>, vector<8x128xf32> -> vector<8x128xf32>
    %c0_3 = arith.constant 0 : index
    %c0_4 = arith.constant 0 : index
    %3 = vector.load %arg3[%c0_3, %c0_4] : memref<1x128xf32, #tpu.memory_space<vmem>>, vector<1x128xf32>
    %4 = vector.broadcast %3 : vector<1x128xf32> to vector<8x128xf32>
    %5 = arith.addf %2, %4 : vector<8x128xf32>
    %cst_5 = arith.constant dense<0xFF800000> : vector<128xf32>
    %6 = vector.multi_reduction <maximumf>, %5, %cst_5 [0] : vector<8x128xf32> to vector<128xf32>
    %7 = vector.shape_cast %6 : vector<128xf32> to vector<1x128xf32>
    %8 = vector.broadcast %7 : vector<1x128xf32> to vector<8x128xf32>
    %9 = arith.subf %5, %8 : vector<8x128xf32>
    %10 = math.exp %9 : vector<8x128xf32>
    %cst_6 = arith.constant dense<0.000000e+00> : vector<128xf32>
    %11 = vector.multi_reduction <add>, %10, %cst_6 [0] : vector<8x128xf32> to vector<128xf32>
    %12 = vector.shape_cast %11 : vector<128xf32> to vector<1x128xf32>
    %13 = math.log %12 : vector<1x128xf32>
    %14 = vector.broadcast %13 : vector<1x128xf32> to vector<8x128xf32>
    %15 = arith.subf %9, %14 : vector<8x128xf32>
    %c0_7 = arith.constant 0 : index
    %c0_8 = arith.constant 0 : index
    %16 = vector.load %arg4[%c0_7, %c0_8] : memref<8x128xf32, #tpu.memory_space<vmem>>, vector<8x128xf32>
    tpu.vector_store %arg4[%c0_7, %c0_8], %15 {strides = array<i32>} : memref<8x128xf32, #tpu.memory_space<vmem>>, vector<8x128xf32>,
    return
  }
  func.func @transform_0(%arg0: i32) -> (i32, i32) {
    %c0_i32 = arith.constant 0 : i32
    %c0_i32_0 = arith.constant 0 : i32
    %c0_i32_1 = arith.constant 0 : i32
    return %c0_i32, %c0_i32_0 : i32, i32
  }
  func.func @transform_1(%arg0: i32) -> (i32, i32) {
    %c0_i32 = arith.constant 0 : i32
    %c0_i32_0 = arith.constant 0 : i32
    return %c0_i32, %arg0 : i32, i32
  }
  func.func @transform_2(%arg0: i32) -> (i32, i32) {
    %c0_i32 = arith.constant 0 : i32
    %c0_i32_0 = arith.constant 0 : i32
    return %c0_i32, %arg0 : i32, i32
  }
  func.func @transform_3(%arg0: i32) -> (i32, i32) {
    %c0_i32 = arith.constant 0 : i32
    %c0_i32_0 = arith.constant 0 : i32
    return %c0_i32, %arg0 : i32, i32
  }
}

</mosaic_0001>

<llo_original>
// kernel: _forward_padded.3
$region0: #{_forward_padded.3}
  #allocation0 [shape = 'u32[]', space=smem, size = 0x4, offset = 0x4, fixed_abs, tag = 'smem constant byte address 0x4 - core index']
  #allocation1 [shape = 'u32[144,128]{1,0:T(1,128)}', space=vmem, size = 0x12000, scoped, tag = 'internal scratch']
  %s0 = inlined_call_operand.vmem [shape: bf16[8,128], index: 0, kind: input, shape index: {}]
  %s1 = inlined_call_operand.vmem [shape: bf16[128,128], index: 1, kind: input, shape index: {}]
  %s2 = inlined_call_operand.vmem [shape: f32[1,128], index: 2, kind: input, shape index: {}]
  %s3 = inlined_call_operand.hbm [shape: f32[8,128], index: 3, kind: output, shape index: {}]
  %s4 = sld [smem:[#allocation0]]
  $region22: #{_forward_padded.3} parent=0
    _
  %s6 = ssub.s32 1, %s4
  %s7 = scalar_select 0, %s6, %s4
  $region1: #{_forward_padded.3} parent=0
    #allocation2 [shape = 'u8[4096]{0}', space=vmem, size = 0x1000, scoped, tag = 'output window, operand 0, single buffered']
    #allocation3 [shape = 's32[1]{0}', space=sflag, size = 0x4, scoped, tag = 'scoped memory for _forward_padded.3']
    %8 = vsyncpa [#allocation3], 0
    // Predicated region
    $region2: #{_forward_padded.3} parent=1 // pred_check
      _
    $region3: #{_forward_padded.3} parent=1 // pred_check_branch
      %10 = sbr.rel (0) target = $region5
    $region4: #{_forward_padded.3} parent=1 // pred_region
      _
    $region5: #{_forward_padded.3} parent=1 // pred_fallthru
      _
    // Predicated region
    $region6: #{_forward_padded.3} parent=1 // pred_check
      _
    $region7: #{_forward_padded.3} parent=1 // pred_check_branch
      %12 = sbr.rel (0) target = $region9
    $region8: #{_forward_padded.3} parent=1 // pred_region
      _
    $region9: #{_forward_padded.3} parent=1 // pred_fallthru
      _
    // Predicated region
    $region10: #{_forward_padded.3} parent=1 // pred_check
      _
    $region11: #{_forward_padded.3} parent=1 // pred_check_branch
      %14 = sbr.rel (0) target = $region13
    $region12: #{_forward_padded.3} parent=1 // pred_region
      _
    $region13: #{_forward_padded.3} parent=1 // pred_fallthru
      _
    %v16 = vld [vmem:[%s0] sm:$0xf]
    %v17 = vld [vmem:[%s1] sm:$0xf]
    %v18 = vld [vmem:[%s1 + $0x4] sm:$0xf]
    %v19 = vld [vmem:[%s1 + $0x8] sm:$0xf]
    %v20 = vld [vmem:[%s1 + $0xc] sm:$0xf]
    %v21 = vld [vmem:[%s1 + $0x10] sm:$0xf]
    %v22 = vld [vmem:[%s1 + $0x14] sm:$0xf]
    %v23 = vld [vmem:[%s1 + $0x18] sm:$0xf]
    %v24 = vld [vmem:[%s1 + $0x1c] sm:$0xf]
    %v25 = vld [vmem:[%s1 + $0x20] sm:$0xf]
    %v26 = vld [vmem:[%s1 + $0x24] sm:$0xf]
    %v27 = vld [vmem:[%s1 + $0x28] sm:$0xf]
    %v28 = vld [vmem:[%s1 + $0x2c] sm:$0xf]
    %v29 = vld [vmem:[%s1 + $0x30] sm:$0xf]
    %v30 = vld [vmem:[%s1 + $0x34] sm:$0xf]
    %v31 = vld [vmem:[%s1 + $0x38] sm:$0xf]
    %v32 = vld [vmem:[%s1 + $0x3c] sm:$0xf]
    %v33 = vld [vmem:[%s2] sm:$0x1]
    %v35 = vlaneseq
    %v36 = vshrl.u32 %v35, 7
    %v37 = vsub.s32 0, %v36
    %v38 = vrot.slane %v33, %v37
    %v56 = vunpack.c.l.b16 %v17
    %v57 = vunpack.c.l.b16 %v18
    %v58 = vunpack.c.l.b16 %v19
    %v59 = vunpack.c.l.b16 %v20
    %v60 = vunpack.c.l.b16 %v21
    %v61 = vunpack.c.l.b16 %v22
    %v62 = vunpack.c.l.b16 %v23
    %v63 = vunpack.c.l.b16 %v24
    %v64 = vunpack.c.l.b16 %v25
    %v65 = vunpack.c.l.b16 %v26
    %v66 = vunpack.c.l.b16 %v27
    %v67 = vunpack.c.l.b16 %v28
    %v68 = vunpack.c.l.b16 %v29
    %v69 = vunpack.c.l.b16 %v30
    %v70 = vunpack.c.l.b16 %v31
    %v71 = vunpack.c.l.b16 %v32
    %v72 = vpack.c.b16 %v57, %v56
    %v73 = vpack.c.b16 %v59, %v58
    %v74 = vpack.c.b16 %v61, %v60
    %v75 = vpack.c.b16 %v63, %v62
    %v76 = vpack.c.b16 %v65, %v64
    %v77 = vpack.c.b16 %v67, %v66
    %v78 = vpack.c.b16 %v69, %v68
    %v79 = vpack.c.b16 %v71, %v70
    %88 = vmatprep.subr.bf16.mxu0 0
    %89 = vmatpush1.bf16.msra.mxu0 %v72
    %90 = vmatprep.subr.bf16.mxu0 0
    %91 = vmatpush1.bf16.msra.mxu0 %v73
    %92 = vmatprep.subr.bf16.mxu0 0
    %93 = vmatpush1.bf16.msra.mxu0 %v74
    %94 = vmatprep.subr.bf16.mxu0 0
    %95 = vmatpush1.bf16.msra.mxu0 %v75
    %96 = vmatprep.subr.bf16.mxu0 0
    %97 = vmatpush1.bf16.msra.mxu0 %v76
    %98 = vmatprep.subr.bf16.mxu0 0
    %99 = vmatpush1.bf16.msra.mxu0 %v77
    %100 = vmatprep.subr.bf16.mxu0 0
    %101 = vmatpush1.bf16.msra.mxu0 %v78
    %102 = vmatprep.subr.bf16.mxu0 0
    %103 = vmatpush1.bf16.msra.mxu0 %v79
    %104 = vmatprep.subr.bf16.mxu0 0
    %105 = vmatpush1.bf16.msra.mxu0 0
    %106 = vmatprep.subr.bf16.mxu0 0
    %107 = vmatpush1.bf16.msra.mxu0 0
    %108 = vmatprep.subr.bf16.mxu0 0
    %109 = vmatpush1.bf16.msra.mxu0 0
    %110 = vmatprep.subr.bf16.mxu0 0
    %111 = vmatpush1.bf16.msra.mxu0 0
    %112 = vmatprep.subr.bf16.mxu0 0
    %113 = vmatpush1.bf16.msra.mxu0 0
    %114 = vmatprep.subr.bf16.mxu0 0
    %115 = vmatpush1.bf16.msra.mxu0 0
    %116 = vmatprep.subr.bf16.mxu0 0
    %117 = vmatpush1.bf16.msra.mxu0 0
    %118 = vmatprep.subr.bf16.mxu0 0
    %119 = vmatpush1.bf16.msra.mxu0 0
    %120 = vmatprep.mubr.bf16.mxu0 0
    %121 = vmatmul.mubr.bf16.gmra.mrb[0].mxu0 %v16
    %v122 = vpop.f32.mrb[0].mxu0
    %v123 = vadd.f32 %v38, %v122
    %v124 = vpop.f32.mrb[0].mxu0
    %v125 = vpop.f32.mrb[0].mxu0
    %v126 = vpop.f32.mrb[0].mxu0
    %127 = vdwg.mxu0
    %v128 = vrot.slane %v123, 4
    %v129 = vmax.f32 %v123, %v128
    %v130 = vrot.slane %v129, 2
    %v131 = vmax.f32 %v129, %v130
    %v132 = vrot.slane %v131, 1
    %v133 = vmax.f32 %v131, %v132
    %v134 = vsub.f32 %v123, %v133
    %v135 = vmul.f32 %v134, 1.442695
    %v136 = vpow.pop %v135
    %v137 = vrot.slane %v136, 4
    %v138 = vadd.f32 %v136, %v137
    %v139 = vrot.slane %v138, 2
    %v140 = vadd.f32 %v138, %v139
    %v141 = vrot.slane %v140, 1
    %v142 = vadd.f32 %v140, %v141
    %v143 = vlog2.pop %v142
    %v144 = vmul.f32 %v143, 0.6931472
    %v145 = vsub.f32 %v134, %v144
    %146 = vst [vmem:[#allocation2] sm:$0xff] %v145
    // Predicated region
    $region14: #{_forward_padded.3} parent=1 // pred_check
      _
    $region15: #{_forward_padded.3} parent=1 // pred_check_branch
      %148 = sbr.rel (0) target = $region17
    $region16: #{_forward_padded.3} parent=1 // pred_region
      %s150 = ssub.s32 128, 128
      %151 = vsyncadd [#allocation3], %s150
      %s153 = sshll.u32 [#allocation2], 4
      %s154 = int_to_ptr.vmem [resolvable:$true] %s153
      %156 = dma.vmem_to_hbm [thread:$0]  %s154, 128, %s3, [#allocation3]
    $region17: #{_forward_padded.3} parent=1 // pred_fallthru
      _
    // Predicated region
    $region18: #{_forward_padded.3} parent=1 // pred_check
      _
    $region19: #{_forward_padded.3} parent=1 // pred_check_branch
      %158 = sbr.rel (0) target = $region21
    $region20: #{_forward_padded.3} parent=1 // pred_region
      %159 = dma.done [#allocation3], 128
    $region21: #{_forward_padded.3} parent=1 // pred_fallthru
      _
    %160 = vsyncpa [#allocation3], 1

// kernel: _forward_padded.2
$region0: #{_forward_padded.2}
  #allocation0 [shape = 'u32[]', space=smem, size = 0x4, offset = 0x4, fixed_abs, tag = 'smem constant byte address 0x4 - core index']
  #allocation1 [shape = 'u32[144,128]{1,0:T(1,128)}', space=vmem, size = 0x12000, scoped, tag = 'internal scratch']
  %s0 = inlined_call_operand.vmem [shape: bf16[8,128], index: 0, kind: input, shape index: {}]
  %s1 = inlined_call_operand.hbm [shape: bf16[128,128], index: 1, kind: input, shape index: {}]
  %s2 = inlined_call_operand.hbm [shape: f32[1,128], index: 2, kind: input, shape index: {}]
  %s3 = inlined_call_operand.vmem [shape: bf16[8,128], index: 3, kind: output, shape index: {}]
  %s4 = sld [smem:[#allocation0]]
  $region30: #{_forward_padded.2} parent=0
    _
  %s6 = ssub.s32 1, %s4
  %s7 = scalar_select 0, %s6, %s4
  $region1: #{_forward_padded.2} parent=0
    #allocation2 [shape = 'u8[32768]{0}', space=vmem, size = 0x8000, scoped, tag = 'input window, operand 1, single buffered']
    #allocation3 [shape = 's32[1]{0}', space=sflag, size = 0x4, scoped, tag = 'scoped memory for _forward_padded.2']
    #allocation4 [shape = 'u8[512]{0}', space=vmem, size = 0x400, scoped, tag = 'input window, operand 2, single buffered']
    #allocation5 [shape = 's32[1]{0}', space=sflag, size = 0x4, scoped, tag = 'scoped memory for _forward_padded.2']
    %8 = vsyncpa [#allocation3], 0
    %9 = vsyncpa [#allocation5], 0
    // Predicated region
    $region2: #{_forward_padded.2} parent=1 // pred_check
      _
    $region3: #{_forward_padded.2} parent=1 // pred_check_branch
      %11 = sbr.rel (0) target = $region5
    $region4: #{_forward_padded.2} parent=1 // pred_region
      _
    $region5: #{_forward_padded.2} parent=1 // pred_fallthru
      _
    // Predicated region
    $region6: #{_forward_padded.2} parent=1 // pred_check
      _
    $region7: #{_forward_padded.2} parent=1 // pred_check_branch
      %13 = sbr.rel (0) target = $region9
    $region8: #{_forward_padded.2} parent=1 // pred_region
      %s15 = ssub.s32 1024, 1024
      %16 = vsyncadd [#allocation3], %s15
      %s17 = sshll.u32 [#allocation2], 4
      %s18 = int_to_ptr.vmem [resolvable:$true] %s17
      %23 = dma.hbm_to_vmem [thread:$0]  %s1, 1024, %s18, [#allocation3], 64, 64, 4
    $region9: #{_forward_padded.2} parent=1 // pred_fallthru
      _
    // Predicated region
    $region10: #{_forward_padded.2} parent=1 // pred_check
      _
    $region11: #{_forward_padded.2} parent=1 // pred_check_branch
      %25 = sbr.rel (0) target = $region13
    $region12: #{_forward_padded.2} parent=1 // pred_region
      %s27 = ssub.s32 16, 16
      %28 = vsyncadd [#allocation5], %s27
      %s30 = sshll.u32 [#allocation4], 4
      %s31 = int_to_ptr.vmem [resolvable:$true] %s30
      %33 = dma.hbm_to_vmem [thread:$0]  %s2, 16, %s31, [#allocation5]
    $region13: #{_forward_padded.2} parent=1 // pred_fallthru
      _
    // Predicated region
    $region14: #{_forward_padded.2} parent=1 // pred_check
      _
    $region15: #{_forward_padded.2} parent=1 // pred_check_branch
      %35 = sbr.rel (0) target = $region17
    $region16: #{_forward_padded.2} parent=1 // pred_region
      %36 = dma.done [#allocation3], 1024
    $region17: #{_forward_padded.2} parent=1 // pred_fallthru
      _
    // Predicated region
    $region18: #{_forward_padded.2} parent=1 // pred_check
      _
    $region19: #{_forward_padded.2} parent=1 // pred_check_branch
      %38 = sbr.rel (0) target = $region21
    $region20: #{_forward_padded.2} parent=1 // pred_region
      %39 = dma.done [#allocation5], 16
    $region21: #{_forward_padded.2} parent=1 // pred_fallthru
      _
    %v41 = vld [vmem:[%s0] sm:$0xf]
    %v42 = vld [vmem:[#allocation2] sm:$0xf]
    %v43 = vld [vmem:[#allocation2 + $0x4] sm:$0xf]
    %v44 = vld [vmem:[#allocation2 + $0x8] sm:$0xf]
    %v45 = vld [vmem:[#allocation2 + $0xc] sm:$0xf]
    %v46 = vld [vmem:[#allocation2 + $0x10] sm:$0xf]
    %v47 = vld [vmem:[#allocation2 + $0x14] sm:$0xf]
    %v48 = vld [vmem:[#allocation2 + $0x18] sm:$0xf]
    %v49 = vld [vmem:[#allocation2 + $0x1c] sm:$0xf]
    %v50 = vld [vmem:[#allocation2 + $0x20] sm:$0xf]
    %v51 = vld [vmem:[#allocation2 + $0x24] sm:$0xf]
    %v52 = vld [vmem:[#allocation2 + $0x28] sm:$0xf]
    %v53 = vld [vmem:[#allocation2 + $0x2c] sm:$0xf]
    %v54 = vld [vmem:[#allocation2 + $0x30] sm:$0xf]
    %v55 = vld [vmem:[#allocation2 + $0x34] sm:$0xf]
    %v56 = vld [vmem:[#allocation2 + $0x38] sm:$0xf]
    %v57 = vld [vmem:[#allocation2 + $0x3c] sm:$0xf]
    %v58 = vld [vmem:[#allocation4] sm:$0x1]
    %v60 = vlaneseq
    %v61 = vshrl.u32 %v60, 7
    %v62 = vsub.s32 0, %v61
    %v63 = vrot.slane %v58, %v62
    %v81 = vunpack.c.l.b16 %v42
    %v82 = vunpack.c.l.b16 %v43
    %v83 = vunpack.c.l.b16 %v44
    %v84 = vunpack.c.l.b16 %v45
    %v85 = vunpack.c.l.b16 %v46
    %v86 = vunpack.c.l.b16 %v47
    %v87 = vunpack.c.l.b16 %v48
    %v88 = vunpack.c.l.b16 %v49
    %v89 = vunpack.c.l.b16 %v50
    %v90 = vunpack.c.l.b16 %v51
    %v91 = vunpack.c.l.b16 %v52
    %v92 = vunpack.c.l.b16 %v53
    %v93 = vunpack.c.l.b16 %v54
    %v94 = vunpack.c.l.b16 %v55
    %v95 = vunpack.c.l.b16 %v56
    %v96 = vunpack.c.l.b16 %v57
    %v97 = vpack.c.b16 %v82, %v81
    %v98 = vpack.c.b16 %v84, %v83
    %v99 = vpack.c.b16 %v86, %v85
    %v100 = vpack.c.b16 %v88, %v87
    %v101 = vpack.c.b16 %v90, %v89
    %v102 = vpack.c.b16 %v92, %v91
    %v103 = vpack.c.b16 %v94, %v93
    %v104 = vpack.c.b16 %v96, %v95
    %113 = vmatprep.subr.bf16.mxu0 0
    %114 = vmatpush1.bf16.msra.mxu0 %v97
    %115 = vmatprep.subr.bf16.mxu0 0
    %116 = vmatpush1.bf16.msra.mxu0 %v98
    %117 = vmatprep.subr.bf16.mxu0 0
    %118 = vmatpush1.bf16.msra.mxu0 %v99
    %119 = vmatprep.subr.bf16.mxu0 0
    %120 = vmatpush1.bf16.msra.mxu0 %v100
    %121 = vmatprep.subr.bf16.mxu0 0
    %122 = vmatpush1.bf16.msra.mxu0 %v101
    %123 = vmatprep.subr.bf16.mxu0 0
    %124 = vmatpush1.bf16.msra.mxu0 %v102
    %125 = vmatprep.subr.bf16.mxu0 0
    %126 = vmatpush1.bf16.msra.mxu0 %v103
    %127 = vmatprep.subr.bf16.mxu0 0
    %128 = vmatpush1.bf16.msra.mxu0 %v104
    %129 = vmatprep.subr.bf16.mxu0 0
    %130 = vmatpush1.bf16.msra.mxu0 0
    %131 = vmatprep.subr.bf16.mxu0 0
    %132 = vmatpush1.bf16.msra.mxu0 0
    %133 = vmatprep.subr.bf16.mxu0 0
    %134 = vmatpush1.bf16.msra.mxu0 0
    %135 = vmatprep.subr.bf16.mxu0 0
    %136 = vmatpush1.bf16.msra.mxu0 0
    %137 = vmatprep.subr.bf16.mxu0 0
    %138 = vmatpush1.bf16.msra.mxu0 0
    %139 = vmatprep.subr.bf16.mxu0 0
    %140 = vmatpush1.bf16.msra.mxu0 0
    %141 = vmatprep.subr.bf16.mxu0 0
    %142 = vmatpush1.bf16.msra.mxu0 0
    %143 = vmatprep.subr.bf16.mxu0 0
    %144 = vmatpush1.bf16.msra.mxu0 0
    %145 = vmatprep.mubr.bf16.mxu0 0
    %146 = vmatmul.mubr.bf16.gmra.mrb[0].mxu0 %v41
    %v147 = vpop.f32.mrb[0].mxu0
    %v148 = vadd.f32 %v63, %v147
    %v149 = vpop.f32.mrb[0].mxu0
    %v150 = vpop.f32.mrb[0].mxu0
    %v151 = vpop.f32.mrb[0].mxu0
    %152 = vdwg.mxu0
    %v153 = vmax.f32 %v148, 0.0
    %v154 = vpack.c.bf16 %v153, %v153
    %155 = vst [vmem:[%s3] sm:$0xf] %v154
    // Predicated region
    $region22: #{_forward_padded.2} parent=1 // pred_check
      _
    $region23: #{_forward_padded.2} parent=1 // pred_check_branch
      %157 = sbr.rel (0) target = $region25
    $region24: #{_forward_padded.2} parent=1 // pred_region
      _
    $region25: #{_forward_padded.2} parent=1 // pred_fallthru
      _
    // Predicated region
    $region26: #{_forward_padded.2} parent=1 // pred_check
      _
    $region27: #{_forward_padded.2} parent=1 // pred_check_branch
      %159 = sbr.rel (0) target = $region29
    $region28: #{_forward_padded.2} parent=1 // pred_region
      _
    $region29: #{_forward_padded.2} parent=1 // pred_fallthru
      _
    %160 = vsyncpa [#allocation3], 1
    %161 = vsyncpa [#allocation5], 1

</llo_original>
